<compile_context>
chip_gen: v7x
topology: tpu7x:2x2x1
jax: 0.10.0
libtpu: 0.0.40
codegen_flags: <defaults>
</compile_context>

<pallas_src>
import functools
import math

import jax
import jax.numpy as jnp
from jax.experimental import pallas as pl
from jax.experimental.pallas import tpu as pltpu


# --------------------------------------------------------------------------
# Kernel 1: conv-as-matmul   out = act(W @ patches + bias)
#   patches: (K, N) bf16 with N = B * H * W on the lane axis (batch folded in)
#   weights: (Cout, K) bf16, accumulation in f32, activation fused.
# --------------------------------------------------------------------------
def _conv_mm_kernel(x_ref, w_ref, b_ref, o_ref, *, act):
    y = jnp.dot(w_ref[...], x_ref[...], preferred_element_type=jnp.float32)
    y = y + b_ref[...]
    if act == "relu":
        y = jnp.maximum(y, 0.0)
    elif act == "sigmoid":
        y = jax.nn.sigmoid(y)
    o_ref[...] = y


def _pick_lane_tile(n, max_tile=4096):
    """Largest lane tile <= max_tile that divides n (full block if n is small)."""
    if n <= max_tile:
        return n
    best = n
    for t in range(128, max_tile + 1, 128):
        if n % t == 0:
            best = t
    return best if best <= max_tile else n


def _conv_mm(patches, wmat, bias, act, compute_dtype):
    K, N = patches.shape
    Cout = wmat.shape[0]
    cpad = max(Cout, 8)                       # keep >= 8 sublanes in the output block
    if cpad != Cout:
        wmat = jnp.pad(wmat, ((0, cpad - Cout), (0, 0)))
        bias = jnp.pad(bias, (0, cpad - Cout))
    tn = _pick_lane_tile(N)
    kern = functools.partial(_conv_mm_kernel, act=act)
    out = pl.pallas_call(
        kern,
        out_shape=jax.ShapeDtypeStruct((cpad, N), jnp.float32),
        grid=(N // tn,),
        in_specs=[
            pl.BlockSpec((K, tn), lambda j: (0, j)),
            pl.BlockSpec((cpad, K), lambda j: (0, 0)),
            pl.BlockSpec((cpad, 1), lambda j: (0, 0)),
        ],
        out_specs=pl.BlockSpec((cpad, tn), lambda j: (0, j)),
        compiler_params=pltpu.CompilerParams(
            dimension_semantics=("parallel",),
            vmem_limit_bytes=32 * 1024 * 1024),
    )(patches.astype(compute_dtype),
      wmat.astype(compute_dtype),
      bias.astype(jnp.float32).reshape(cpad, 1))
    return out[:Cout]


def _im2col_folded(xp, kh, kw, ho, wo):
    """(B, C, Hp, Wp) padded input -> (kh*kw*C, B*ho*wo) patches (batch on lanes)."""
    B, C, _, _ = xp.shape
    taps = [xp[:, :, dy:dy + ho, dx:dx + wo]
            for dy in range(kh) for dx in range(kw)]
    p = jnp.stack(taps, axis=0)               # (T, B, C, ho, wo)
    p = p.transpose(0, 2, 1, 3, 4)            # (T, C, B, ho, wo)
    return p.reshape(kh * kw * C, B * ho * wo)


def conv2d_pallas(x, w, b, *, padding=0, act="none", compute_dtype=jnp.bfloat16):
    """Stride-1 Conv2d (NCHW / OIHW) as a single lane-dense Pallas matmul."""
    B, Cin, H, W = x.shape
    Cout, _, kh, kw = w.shape
    ho, wo = H + 2 * padding - kh + 1, W + 2 * padding - kw + 1
    if kh == 1 and kw == 1:                   # 1x1 conv: no im2col at all
        patches = x.reshape(B, Cin, H * W).transpose(1, 0, 2).reshape(Cin, B * H * W)
    else:
        xp = jnp.pad(x, ((0, 0), (0, 0), (padding, padding), (padding, padding)))
        patches = _im2col_folded(xp, kh, kw, ho, wo)
    wmat = w.transpose(0, 2, 3, 1).reshape(Cout, kh * kw * Cin)
    out = _conv_mm(patches, wmat, b, act, compute_dtype)        # (Cout, B*ho*wo)
    return out.reshape(Cout, B, ho, wo).transpose(1, 0, 2, 3)


def conv_transpose2d_pallas(x, w, b, *, act="none", compute_dtype=jnp.bfloat16):
    """ConvTranspose2d(kernel=4, stride=2, padding=1) via exact polyphase decomposition.

    The four output parities are 2x2 stride-1 convs on the (pad-1) input; they are
    embedded into one (4*Cout, 9*Cin) weight acting on a 3x3 im2col at the *input*
    resolution, then pixel-shuffled to (2H, 2W) in the wrapper.  No zero-dilated
    input, no wasted MACs on inserted zeros.
    """
    B, Cin, H, W = x.shape
    _, Cout, _, _ = w.shape                   # PyTorch weight layout: (Cin, Cout, 4, 4)
    # embedded 3x3 phase weights: W3[py, px, co, ci, r, s]
    w3 = jnp.zeros((2, 2, Cout, Cin, 3, 3), w.dtype)
    for py in range(2):
        for px in range(2):
            for a in range(2):
                for bb in range(2):
                    w3 = w3.at[py, px, :, :, py + a, px + bb].set(
                        w[:, :, 3 - py - 2 * a, 3 - px - 2 * bb].T)
    # (phase*Cout) rows, (tap*Cin) cols -- matches the im2col patch layout
    wmat = w3.transpose(0, 1, 2, 4, 5, 3).reshape(4 * Cout, 9 * Cin)
    xp = jnp.pad(x, ((0, 0), (0, 0), (1, 1), (1, 1)))
    patches = _im2col_folded(xp, 3, 3, H, W)
    bias4 = jnp.tile(b, 4)
    out = _conv_mm(patches, wmat, bias4, act, compute_dtype)    # (4*Cout, B*H*W)
    out = out.reshape(2, 2, Cout, B, H, W)                      # (py, px, co, b, m, n)
    out = out.transpose(3, 2, 4, 0, 5, 1).reshape(B, Cout, 2 * H, 2 * W)
    return out


# --------------------------------------------------------------------------
# Kernel 2: nn.MultiheadAttention (query = cnn tokens, key = value = swinT tokens)
#   tokens are flattened batch-major to (T, C) = (B * n_tok, C); a block-diagonal
#   mask (built in-kernel from two tiny batch-id vectors) keeps batches separated.
# --------------------------------------------------------------------------
def _mha_kernel(q_ref, kv_ref, bidr_ref, bidc_ref, wq_ref, wkv_ref,
                bq_ref, bkv_ref, wo_ref, bo_ref, o_ref, *, heads, dim_head):
    T, C = q_ref.shape
    scale = dim_head ** -0.5
    q = q_ref[...]
    kv = kv_ref[...]
    qp = jnp.dot(q, wq_ref[...], preferred_element_type=jnp.float32) + bq_ref[...]
    kvp = jnp.dot(kv, wkv_ref[...], preferred_element_type=jnp.float32) + bkv_ref[...]
    kp = kvp[:, :C]
    vp = kvp[:, C:]
    same = bidr_ref[...] == bidc_ref[...]                    # (T, T) block-diag mask
    acc = jnp.zeros((T, C), jnp.float32) + bo_ref[...]
    for h in range(heads):                                   # static unroll over heads
        sl = slice(h * dim_head, (h + 1) * dim_head)
        s = jax.lax.dot_general(qp[:, sl] * scale, kp[:, sl],
                                (((1,), (1,)), ((), ())),
                                preferred_element_type=jnp.float32)
        s = jnp.where(same, s, -1e30)
        m = jnp.max(s, axis=-1, keepdims=True)
        e = jnp.exp(s - m)
        r = pl.reciprocal(jnp.sum(e, axis=-1, keepdims=True), approx=True)
        ah = jnp.dot(e * r, vp[:, sl], preferred_element_type=jnp.float32)
        # lane-dense accumulation: attn_h @ Wo[h*dh:(h+1)*dh, :] into the full (T, C)
        acc = acc + jnp.dot(ah, wo_ref[sl, :], preferred_element_type=jnp.float32)
    o_ref[...] = acc


def mha_pallas(q2, kv2, bid, params, *, num_heads):
    T, C = q2.shape
    dh = C // num_heads
    in_w = params["in_proj_w"]                               # (3C, C) rows [Wq; Wk; Wv]
    in_b = params["in_proj_b"]
    args = (q2.astype(jnp.float32), kv2.astype(jnp.float32),
            bid.reshape(T, 1), bid.reshape(1, T),
            in_w[:C].T, in_w[C:].T,                          # Wq (C,C), fused WkWv (C,2C)
            in_b[:C].reshape(1, C), in_b[C:].reshape(1, 2 * C),
            params["out_proj_w"].T, params["out_proj_b"].reshape(1, C))

    def full(a):
        shp = a.shape
        return pl.BlockSpec(shp, lambda *_: (0,) * len(shp))

    kern = functools.partial(_mha_kernel, heads=num_heads, dim_head=dh)
    return pl.pallas_call(
        kern,
        out_shape=jax.ShapeDtypeStruct((T, C), jnp.float32),
        grid=(1,),
        in_specs=[full(a) for a in args],
        out_specs=pl.BlockSpec((T, C), lambda i: (0, 0)),
        compiler_params=pltpu.CompilerParams(vmem_limit_bytes=32 * 1024 * 1024),
    )(*args)


# --------------------------------------------------------------------------
# Kernel 3: gated blend   out = gate * attended + (1 - gate) * down  (one grid step)
# --------------------------------------------------------------------------
def _blend_kernel(g_ref, a_ref, x_ref, o_ref):
    g = g_ref[...]
    o_ref[...] = g * a_ref[...] + (1.0 - g) * x_ref[...]


def gated_blend_pallas(gate, attended, down):
    B, C, L = down.shape
    return pl.pallas_call(
        _blend_kernel,
        out_shape=jax.ShapeDtypeStruct((B, C, L), jnp.float32),
        grid=(1,),
        in_specs=[
            pl.BlockSpec((B, 1, L), lambda i: (0, 0, 0)),
            pl.BlockSpec((B, C, L), lambda i: (0, 0, 0)),
            pl.BlockSpec((B, C, L), lambda i: (0, 0, 0)),
        ],
        out_specs=pl.BlockSpec((B, C, L), lambda i: (0, 0, 0)),
        compiler_params=pltpu.CompilerParams(vmem_limit_bytes=32 * 1024 * 1024),
    )(gate, attended, down)


# --------------------------------------------------------------------------
# GatedCrossAttention forward: Pallas kernels + thin JAX glue
# --------------------------------------------------------------------------
def gated_cross_attention_pallas(down, swin, params, *, num_heads, top_idx=None):
    B, C, H, W = down.shape

    # swinT transform (1x1 conv) + upsample blocks (polyphase ConvT + ReLU + 3x3 conv)
    s = conv2d_pallas(swin, params["wt"], params["bt"], padding=0)
    for blk in params["up"]:
        s = conv_transpose2d_pallas(s, blk["wdec"], blk["bdec"], act="relu")
        s = conv2d_pallas(s, blk["wconv"], blk["bconv"], padding=1)

    # gate = sigmoid(1x1 conv(down))
    gate = conv2d_pallas(down, params["wg"], params["bg"], padding=0, act="sigmoid")

    # TODO(synk): data-dependent top-k size / selection / gather / index_copy_ have no
    # clean Pallas equivalent (dynamic shapes, data-dependent indices); wrapper ops.
    current_k = int(H * W * float(jax.nn.sigmoid(params["k_raw"])[0]))
    gate_flat = gate.reshape(B, H * W)
    if top_idx is None:
        _, top_idx = jax.lax.top_k(gate_flat, current_k)          # (B, current_k)
    idx = top_idx.reshape(-1)                                     # (B*current_k,)

    down_flat = down.reshape(B, C, H * W).transpose(2, 0, 1)      # (HW, B, C)
    swin_flat = s.reshape(B, C, -1).transpose(2, 0, 1)            # (HW, B, C)
    q_sub = jnp.take(down_flat, idx, axis=0)                      # (n_tok, B, C)
    kv_sub = jnp.take(swin_flat, idx, axis=0)

    n_tok = idx.shape[0]
    q2 = q_sub.transpose(1, 0, 2).reshape(B * n_tok, C)           # batch-major tokens
    kv2 = kv_sub.transpose(1, 0, 2).reshape(B * n_tok, C)
    bid = jnp.repeat(jnp.arange(B, dtype=jnp.int32), n_tok)       # (T,) batch ids

    att2 = mha_pallas(q2, kv2, bid, params, num_heads=num_heads)
    att_sub = att2.reshape(B, n_tok, C).transpose(1, 0, 2)        # (n_tok, B, C)

    attended_flat = down_flat.at[idx].set(att_sub)                # index_copy_
    attended = attended_flat.transpose(1, 2, 0).reshape(B, C, H * W)

    out = gated_blend_pallas(gate.reshape(B, 1, H * W), attended,
                             down.reshape(B, C, H * W))
    return out.reshape(B, C, H, W), gate, top_idx


# --------------------------------------------------------------------------
# Pure-JAX / XLA reference (same bf16-input / f32-accumulation conv numerics)
# --------------------------------------------------------------------------
def _conv2d_ref(x, w, b, padding, compute_dtype=jnp.bfloat16):
    out = jax.lax.conv_general_dilated(
        x.astype(compute_dtype), w.astype(compute_dtype), (1, 1),
        [(padding, padding), (padding, padding)],
        dimension_numbers=("NCHW", "OIHW", "NCHW"),
        preferred_element_type=jnp.float32)
    return out + b[None, :, None, None]


def _conv_transpose2d_ref(x, w, b, compute_dtype=jnp.bfloat16):
    w_eq = jnp.flip(w, (2, 3)).transpose(1, 0, 2, 3)
    out = jax.lax.conv_general_dilated(
        x.astype(compute_dtype), w_eq.astype(compute_dtype), (1, 1), [(2, 2), (2, 2)],
        lhs_dilation=(2, 2), dimension_numbers=("NCHW", "OIHW", "NCHW"),
        preferred_element_type=jnp.float32)
    return out + b[None, :, None, None]


def _mha_ref(q, k, v, params, num_heads):
    L, B, C = q.shape
    dh = C // num_heads
    wq, wk, wv = jnp.split(params["in_proj_w"], 3, axis=0)
    bq, bk, bv = jnp.split(params["in_proj_b"], 3)
    qp = q @ wq.T + bq
    kp = k @ wk.T + bk
    vp = v @ wv.T + bv

    def heads(t):
        return t.reshape(L, B * num_heads, dh).transpose(1, 0, 2)

    qh, kh, vh = heads(qp), heads(kp), heads(vp)
    s = jnp.einsum("nld,nmd->nlm", qh, kh) * dh ** -0.5
    p = jax.nn.softmax(s, axis=-1)
    o = jnp.einsum("nlm,nmd->nld", p, vh)
    o = o.transpose(1, 0, 2).reshape(L, B, C)
    return o @ params["out_proj_w"].T + params["out_proj_b"]


def gated_cross_attention_ref(down, swin, params, *, num_heads, top_idx=None):
    B, C, H, W = down.shape
    s = _conv2d_ref(swin, params["wt"], params["bt"], 0)
    for blk in params["up"]:
        s = jax.nn.relu(_conv_transpose2d_ref(s, blk["wdec"], blk["bdec"]))
        s = _conv2d_ref(s, blk["wconv"], blk["bconv"], 1)
    gate = jax.nn.sigmoid(_conv2d_ref(down, params["wg"], params["bg"], 0))

    current_k = int(H * W * float(jax.nn.sigmoid(params["k_raw"])[0]))
    gate_flat = gate.reshape(B, H * W)
    if top_idx is None:
        _, top_idx = jax.lax.top_k(gate_flat, current_k)
    idx = top_idx.reshape(-1)

    down_flat = down.reshape(B, C, H * W).transpose(2, 0, 1)
    swin_flat = s.reshape(B, C, -1).transpose(2, 0, 1)
    q_sub = jnp.take(down_flat, idx, axis=0)
    kv_sub = jnp.take(swin_flat, idx, axis=0)
    att_sub = _mha_ref(q_sub, kv_sub, kv_sub, params, num_heads)
    attended_flat = down_flat.at[idx].set(att_sub)
    attended = attended_flat.transpose(1, 2, 0).reshape(B, C, H, W)
    return gate * attended + (1.0 - gate) * down, gate, top_idx


# --------------------------------------------------------------------------
# Params + test
# --------------------------------------------------------------------------
def init_params(key, cnn_c, swin_c, upsample_factor):
    keys = iter(jax.random.split(key, 8 + 4 * upsample_factor))

    def unif(shape, fan_in):
        bound = 1.0 / math.sqrt(fan_in)
        return jax.random.uniform(next(keys), shape, jnp.float32, -bound, bound)

    params = {
        "wt": unif((cnn_c, swin_c, 1, 1), swin_c),
        "bt": unif((cnn_c,), swin_c),
        "wg": unif((1, cnn_c, 1, 1), cnn_c),
        "bg": unif((1,), cnn_c),
        "in_proj_w": unif((3 * cnn_c, cnn_c), cnn_c),
        "in_proj_b": unif((3 * cnn_c,), cnn_c),
        "out_proj_w": unif((cnn_c, cnn_c), cnn_c),
        "out_proj_b": unif((cnn_c,), cnn_c),
        "k_raw": jnp.array([math.log(0.01 / (1 - 0.01))], jnp.float32),
        "up": [],
    }
    for _ in range(upsample_factor):
        params["up"].append({
            "wdec": unif((cnn_c, cnn_c, 4, 4), cnn_c * 16),
            "bdec": unif((cnn_c,), cnn_c * 16),
            "wconv": unif((cnn_c, cnn_c, 3, 3), cnn_c * 9),
            "bconv": unif((cnn_c,), cnn_c * 9),
        })
    return params


if __name__ == "__main__":
    B = 2
    cnn_channels, swin_channels = 32, 16
    num_heads = 4
    upsample_factor = 3              # swinT spatial 4 -> 32, matches cnn 32x32
    H = W = 32
    Hs = Ws = H // (2 ** upsample_factor)

    key = jax.random.PRNGKey(0)
    k_down, k_swin, k_par = jax.random.split(key, 3)
    down = jax.random.normal(k_down, (B, cnn_channels, H, W), jnp.float32)
    swin = jax.random.normal(k_swin, (B, swin_channels, Hs, Ws), jnp.float32)
    params = init_params(k_par, cnn_channels, swin_channels, upsample_factor)

    out, gate, idx = gated_cross_attention_pallas(
        down, swin, params, num_heads=num_heads)
    out = jax.block_until_ready(out)

    # reference uses the same selected indices to avoid top-k near-tie flakiness
    out_ref, gate_ref, _ = gated_cross_attention_ref(
        down, swin, params, num_heads=num_heads, top_idx=idx)

    assert out.shape == (B, cnn_channels, H, W)
    assert jnp.allclose(gate, gate_ref, atol=5e-3, rtol=5e-3), \
        float(jnp.max(jnp.abs(gate - gate_ref)))
    assert jnp.allclose(out, out_ref, atol=1e-2, rtol=1e-2), \
        float(jnp.max(jnp.abs(out - out_ref)))
    print("KERNEL_OK")
</pallas_src>

<mosaic_0001>
module attributes {stable_mosaic.version = 11 : i64} {
  func.func @_conv_mm_kernel(%arg0: i32, %arg1: memref<16x32xbf16, #tpu.memory_space<vmem>>, %arg2: memref<32x16xbf16, #tpu.memory_space<vmem>>, %arg3: memref<32x1xf32, #tpu.memory_space<vmem>>, %arg4: memref<32x32xf32, #tpu.memory_space<vmem>>) attributes {dimension_semantics = [#tpu.dimension_semantics<parallel>], iteration_bounds = array<i64: 1>, scalar_prefetch = 0 : i64, scratch_operands = 0 : i64, tpu.core_type = #tpu.core_type<tc>, window_params = [{transform_indices = @transform_0, window_bounds = array<i64: 16, 32>}, {pipeline_mode = #tpu.pipeline_mode<synchronous>, transform_indices = @transform_1, window_bounds = array<i64: 32, 16>}, {pipeline_mode = #tpu.pipeline_mode<synchronous>, transform_indices = @transform_2, window_bounds = array<i64: 32, 1>}, {transform_indices = @transform_3, window_bounds = array<i64: 32, 32>}]} {
    %c0 = arith.constant 0 : index
    %c0_0 = arith.constant 0 : index
    %0 = vector.load %arg2[%c0, %c0_0] : memref<32x16xbf16, #tpu.memory_space<vmem>>, vector<32x16xbf16>
    %c0_1 = arith.constant 0 : index
    %c0_2 = arith.constant 0 : index
    %1 = vector.load %arg1[%c0_1, %c0_2] : memref<16x32xbf16, #tpu.memory_space<vmem>>, vector<16x32xbf16>
    %cst = arith.constant dense<0.000000e+00> : vector<32x32xf32>
    %2 = tpu.matmul %0, %1, %cst {dimension_numbers = #tpu.dot_dimension_numbers<[1], [0], [0], [1], [0, 0, 1, 1], [], []>} : vector<32x16xbf16>, vector<16x32xbf16>, vector<32x32xf32> -> vector<32x32xf32>
    %c0_3 = arith.constant 0 : index
    %c0_4 = arith.constant 0 : index
    %3 = vector.load %arg3[%c0_3, %c0_4] : memref<32x1xf32, #tpu.memory_space<vmem>>, vector<32x1xf32>
    %4 = vector.broadcast %3 : vector<32x1xf32> to vector<32x32xf32>
    %5 = arith.addf %2, %4 : vector<32x32xf32>
    %c0_5 = arith.constant 0 : index
    %c0_6 = arith.constant 0 : index
    %6 = vector.load %arg4[%c0_5, %c0_6] : memref<32x32xf32, #tpu.memory_space<vmem>>, vector<32x32xf32>
    tpu.vector_store %arg4[%c0_5, %c0_6], %5 {strides = array<i32>} : memref<32x32xf32, #tpu.memory_space<vmem>>, vector<32x32xf32>,
    return
  }
  func.func @transform_0(%arg0: i32) -> (i32, i32) {
    %c0_i32 = arith.constant 0 : i32
    %c0_i32_0 = arith.constant 0 : i32
    return %c0_i32, %arg0 : i32, i32
  }
  func.func @transform_1(%arg0: i32) -> (i32, i32) {
    %c0_i32 = arith.constant 0 : i32
    %c0_i32_0 = arith.constant 0 : i32
    %c0_i32_1 = arith.constant 0 : i32
    return %c0_i32, %c0_i32_0 : i32, i32
  }
  func.func @transform_2(%arg0: i32) -> (i32, i32) {
    %c0_i32 = arith.constant 0 : i32
    %c0_i32_0 = arith.constant 0 : i32
    %c0_i32_1 = arith.constant 0 : i32
    return %c0_i32, %c0_i32_0 : i32, i32
  }
  func.func @transform_3(%arg0: i32) -> (i32, i32) {
    %c0_i32 = arith.constant 0 : i32
    %c0_i32_0 = arith.constant 0 : i32
    return %c0_i32, %arg0 : i32, i32
  }
}

</mosaic_0001>

<llo_original>
// kernel: tpu_custom_call.1
$region0: #{tpu_custom_call.1}
  #allocation0 [shape = 'u32[]', space=smem, size = 0x4, offset = 0x4, fixed_abs, tag = 'smem constant byte address 0x4 - core index']
  #allocation1 [shape = 'u32[144,128]{1,0:T(1,128)}', space=vmem, size = 0x12000, scoped, tag = 'internal scratch']
  %s0 = inlined_call_operand.vmem [shape: bf16[16,32], index: 0, kind: input, shape index: {}]
  %s1 = inlined_call_operand.vmem [shape: bf16[32,16], index: 1, kind: input, shape index: {}]
  %s2 = inlined_call_operand.vmem [shape: f32[32,1], index: 2, kind: input, shape index: {}]
  %s3 = inlined_call_operand.hbm [shape: f32[32,32], index: 3, kind: output, shape index: {}]
  %s4 = sld [smem:[#allocation0]]
  $region22: #{tpu_custom_call.1} parent=0
    _
  %s6 = ssub.s32 1, %s4
  %s7 = scalar_select 0, %s6, %s4
  $region1: #{tpu_custom_call.1} parent=0
    #allocation2 [shape = 'u8[16384]{0}', space=vmem, size = 0x4000, scoped, tag = 'output window, operand 0, single buffered']
    #allocation3 [shape = 's32[1]{0}', space=sflag, size = 0x4, scoped, tag = 'scoped memory for tpu_custom_call.1']
    %8 = vsyncpa [#allocation3], 0
    // Predicated region
    $region2: #{tpu_custom_call.1} parent=1 // pred_check
      _
    $region3: #{tpu_custom_call.1} parent=1 // pred_check_branch
      %10 = sbr.rel (0) target = $region5
    $region4: #{tpu_custom_call.1} parent=1 // pred_region
      _
    $region5: #{tpu_custom_call.1} parent=1 // pred_fallthru
      _
    // Predicated region
    $region6: #{tpu_custom_call.1} parent=1 // pred_check
      _
    $region7: #{tpu_custom_call.1} parent=1 // pred_check_branch
      %12 = sbr.rel (0) target = $region9
    $region8: #{tpu_custom_call.1} parent=1 // pred_region
      _
    $region9: #{tpu_custom_call.1} parent=1 // pred_fallthru
      _
    // Predicated region
    $region10: #{tpu_custom_call.1} parent=1 // pred_check
      _
    $region11: #{tpu_custom_call.1} parent=1 // pred_check_branch
      %14 = sbr.rel (0) target = $region13
    $region12: #{tpu_custom_call.1} parent=1 // pred_region
      _
    $region13: #{tpu_custom_call.1} parent=1 // pred_fallthru
      _
    %v16 = vld [vmem:[%s1] sm:$0xf]
    %v17 = vld [vmem:[%s1 + $0x4] sm:$0xf]
    %v18 = vld [vmem:[%s1 + $0x8] sm:$0xf]
    %v19 = vld [vmem:[%s1 + $0xc] sm:$0xf]
    %v20 = vld [vmem:[%s0] sm:$0xf]
    %v21 = vld [vmem:[%s0 + $0x4] sm:$0xf]
    %v22 = vld [vmem:[%s2] sm:$0xff]
    %v23 = vld [vmem:[%s2 + $0x8] sm:$0xff]
    %v24 = vld [vmem:[%s2 + $0x10] sm:$0xff]
    %v25 = vld [vmem:[%s2 + $0x18] sm:$0xff]
    %27 = vset.pattern.permute.xlu0 0
    %28 = vperm.xlu0 %27, %v22
    %v29 = vpop.permute.xlu0 %28
    %32 = vset.pattern.permute.xlu0 0
    %33 = vperm.xlu0 %32, %v23
    %v34 = vpop.permute.xlu0 %33
    %37 = vset.pattern.permute.xlu0 0
    %38 = vperm.xlu0 %37, %v24
    %v39 = vpop.permute.xlu0 %38
    %42 = vset.pattern.permute.xlu0 0
    %43 = vperm.xlu0 %42, %v25
    %v44 = vpop.permute.xlu0 %43
    %v50 = vunpack.c.l.b16 %v16
    %v51 = vunpack.c.l.b16 %v17
    %v52 = vunpack.c.l.b16 %v18
    %v53 = vunpack.c.l.b16 %v19
    %v54 = vpack.c.b16 %v51, %v50
    %v55 = vpack.c.b16 %v53, %v52
    %v58 = vunpack.c.l.b16 %v20
    %v59 = vunpack.c.l.b16 %v21
    %v60 = vpack.c.b16 %v59, %v58
    %vm62 = vcmask 130048
    %v64 = vsel %vm62, %v54, 0
    %v67 = vsel %vm62, %v55, 0
    %69 = vmatprep.subr.bf16.mxu0 0
    %70 = vmatpush1.bf16.msra.mxu0 %v60
    %71 = vmatprep.subr.bf16.mxu0 0
    %72 = vmatpush1.bf16.msra.mxu0 0
    %73 = vmatprep.subr.bf16.mxu0 0
    %74 = vmatpush1.bf16.msra.mxu0 0
    %75 = vmatprep.subr.bf16.mxu0 0
    %76 = vmatpush1.bf16.msra.mxu0 0
    %77 = vmatprep.subr.bf16.mxu0 0
    %78 = vmatpush1.bf16.msra.mxu0 0
    %79 = vmatprep.subr.bf16.mxu0 0
    %80 = vmatpush1.bf16.msra.mxu0 0
    %81 = vmatprep.subr.bf16.mxu0 0
    %82 = vmatpush1.bf16.msra.mxu0 0
    %83 = vmatprep.subr.bf16.mxu0 0
    %84 = vmatpush1.bf16.msra.mxu0 0
    %85 = vmatprep.subr.bf16.mxu0 0
    %86 = vmatpush1.bf16.msra.mxu0 0
    %87 = vmatprep.subr.bf16.mxu0 0
    %88 = vmatpush1.bf16.msra.mxu0 0
    %89 = vmatprep.subr.bf16.mxu0 0
    %90 = vmatpush1.bf16.msra.mxu0 0
    %91 = vmatprep.subr.bf16.mxu0 0
    %92 = vmatpush1.bf16.msra.mxu0 0
    %93 = vmatprep.subr.bf16.mxu0 0
    %94 = vmatpush1.bf16.msra.mxu0 0
    %95 = vmatprep.subr.bf16.mxu0 0
    %96 = vmatpush1.bf16.msra.mxu0 0
    %97 = vmatprep.subr.bf16.mxu0 0
    %98 = vmatpush1.bf16.msra.mxu0 0
    %99 = vmatprep.subr.bf16.mxu0 0
    %100 = vmatpush1.bf16.msra.mxu0 0
    %101 = vmatprep.mubr.bf16.mxu0 0
    %102 = vmatmul.mubr.bf16.gmra.mrb[0].mxu0 %v64
    %v103 = vpop.f32.mrb[0].mxu0
    %v104 = vadd.f32 %v29, %v103
    %v105 = vpop.f32.mrb[0].mxu0
    %v106 = vpop.f32.mrb[0].mxu0
    %v107 = vadd.f32 %v34, %v106
    %v108 = vpop.f32.mrb[0].mxu0
    %109 = vmatprep.mubr.bf16.mxu0 0
    %110 = vmatmul.mubr.bf16.gmra.mrb[0].mxu0 %v67
    %v111 = vpop.f32.mrb[0].mxu0
    %v112 = vadd.f32 %v39, %v111
    %v113 = vpop.f32.mrb[0].mxu0
    %v114 = vpop.f32.mrb[0].mxu0
    %v115 = vadd.f32 %v44, %v114
    %v116 = vpop.f32.mrb[0].mxu0
    %117 = vdwg.mxu0
    %vm118 = vcmask 261120
    %119 = vst.msk [vmem:[#allocation2] sm:$0xff] %vm118, %v104
    %120 = vst.msk [vmem:[#allocation2 + $0x8] sm:$0xff] %vm118, %v107
    %121 = vst.msk [vmem:[#allocation2 + $0x10] sm:$0xff] %vm118, %v112
    %122 = vst.msk [vmem:[#allocation2 + $0x18] sm:$0xff] %vm118, %v115
    // Predicated region
    $region14: #{tpu_custom_call.1} parent=1 // pred_check
      _
    $region15: #{tpu_custom_call.1} parent=1 // pred_check_branch
      %124 = sbr.rel (0) target = $region17
    $region16: #{tpu_custom_call.1} parent=1 // pred_region
      %s126 = ssub.s32 512, 512
      %127 = vsyncadd [#allocation3], %s126
      %s128 = sshll.u32 [#allocation2], 4
      %s129 = int_to_ptr.vmem [resolvable:$true] %s128
      %134 = dma.vmem_to_hbm [thread:$0]  %s129, 512, %s3, [#allocation3], 128, 128, 8
    $region17: #{tpu_custom_call.1} parent=1 // pred_fallthru
      _
    // Predicated region
    $region18: #{tpu_custom_call.1} parent=1 // pred_check
      _
    $region19: #{tpu_custom_call.1} parent=1 // pred_check_branch
      %136 = sbr.rel (0) target = $region21
    $region20: #{tpu_custom_call.1} parent=1 // pred_region
      %137 = dma.done [#allocation3], 512
    $region21: #{tpu_custom_call.1} parent=1 // pred_fallthru
      _
    %138 = vsyncpa [#allocation3], 1

</llo_original>
